<compile_context>
chip_gen: v5e
topology: v5e:2x2
jax: 0.10.0
libtpu: 0.0.40
codegen_flags: <defaults>
</compile_context>

<pallas_src>
import jax
import jax.numpy as jnp
from jax.experimental import pallas as pl
from jax.experimental.pallas import tpu as pltpu

_LANES = 128           # vreg lane width: keep the last dim lane-dense
_ROW_ALIGN = 32        # sublane alignment safe for f32 / bf16 / int8
_MAX_TILE_ROWS = 2048  # 2048 x 128 x 4B = 1 MiB per f32 tile


# ----------------------------------------------------------------------------
# Pallas kernels
# ----------------------------------------------------------------------------
def _copy_kernel(x_ref, o_ref):
    # forward of GradientReverse is the identity
    o_ref[...] = x_ref[...]


def _scale_kernel(neg_alpha_ref, g_ref, o_ref):
    # backward of GradientReverse: grad_in = (-alpha) * grad_out
    # (-alpha) is a pre-negated f32 scalar in SMEM; the multiply runs on VPU.
    o_ref[...] = (g_ref[...] * neg_alpha_ref[0]).astype(o_ref.dtype)


# ----------------------------------------------------------------------------
# Slab packing helpers: arbitrary shape -> lane-dense (rows, 128) layout
# ----------------------------------------------------------------------------
def _tile_layout(n_elems):
    rows_needed = max(1, (n_elems + _LANES - 1) // _LANES)
    tile_rows = min(
        _MAX_TILE_ROWS,
        ((rows_needed + _ROW_ALIGN - 1) // _ROW_ALIGN) * _ROW_ALIGN,
    )
    rows = ((rows_needed + tile_rows - 1) // tile_rows) * tile_rows
    return rows, tile_rows


def _as_rows(x):
    n = x.size
    rows, tile_rows = _tile_layout(n)
    flat = x.reshape(-1)
    pad = rows * _LANES - n
    if pad:
        flat = jnp.pad(flat, (0, pad))
    return flat.reshape(rows, _LANES), tile_rows, n


def _from_rows(y2d, n, shape, dtype):
    return y2d.reshape(-1)[:n].reshape(shape).astype(dtype)


# ----------------------------------------------------------------------------
# pallas_call wrappers
# ----------------------------------------------------------------------------
def _pallas_identity(x):
    x2d, tile_rows, n = _as_rows(x)
    rows = x2d.shape[0]
    y2d = pl.pallas_call(
        _copy_kernel,
        out_shape=jax.ShapeDtypeStruct(x2d.shape, x2d.dtype),
        grid=(rows // tile_rows,),
        in_specs=[pl.BlockSpec((tile_rows, _LANES), lambda i: (i, 0))],
        out_specs=pl.BlockSpec((tile_rows, _LANES), lambda i: (i, 0)),
        compiler_params=pltpu.CompilerParams(
            dimension_semantics=("parallel",)),
    )(x2d)
    return _from_rows(y2d, n, x.shape, x.dtype)


def _pallas_neg_scale(g, alpha):
    g2d, tile_rows, n = _as_rows(g)
    rows = g2d.shape[0]
    # Pre-negate on the host so the kernel is a single scalar-broadcast vmul.
    neg_alpha = (-jnp.asarray(alpha, jnp.float32)).reshape(1)
    y2d = pl.pallas_call(
        _scale_kernel,
        out_shape=jax.ShapeDtypeStruct(g2d.shape, g2d.dtype),
        grid=(rows // tile_rows,),
        in_specs=[
            pl.BlockSpec(memory_space=pltpu.MemorySpace.SMEM),    # -alpha scalar
            pl.BlockSpec((tile_rows, _LANES), lambda i: (i, 0)),  # grad tiles
        ],
        out_specs=pl.BlockSpec((tile_rows, _LANES), lambda i: (i, 0)),
        compiler_params=pltpu.CompilerParams(
            dimension_semantics=("parallel",)),
    )(neg_alpha, g2d)
    return _from_rows(y2d, n, g.shape, g.dtype)


# ----------------------------------------------------------------------------
# custom_vjp: forward = Pallas identity, backward = Pallas (-alpha * g)
# ----------------------------------------------------------------------------
@jax.custom_vjp
def gradient_reverse(x, alpha):
    return _pallas_identity(x)


def _gr_fwd(x, alpha):
    return _pallas_identity(x), jnp.asarray(alpha, jnp.float32)


def _gr_bwd(alpha, g):
    # matches RevGrad.backward: grad_x = -alpha * grad_out, grad_alpha = None
    return _pallas_neg_scale(g, alpha), jnp.zeros_like(alpha)


gradient_reverse.defvjp(_gr_fwd, _gr_bwd)


class GradientReverse:
    """JAX/Pallas analogue of the PyTorch GradientReverse module."""

    def __init__(self, alpha=1.0):
        self.alpha = jnp.float32(alpha)

    def __call__(self, x):
        return gradient_reverse(x, self.alpha)


# ----------------------------------------------------------------------------
if __name__ == "__main__":
    key = jax.random.PRNGKey(0)
    B, C, H, W = 2, 4, 16, 16
    x = jax.random.normal(key, (B, C, H, W), jnp.float32)

    layer = GradientReverse(alpha=1.0)

    # forward: identity
    y = jax.jit(layer.__call__)(x)
    jax.block_until_ready(y)
    assert y.shape == x.shape and y.dtype == x.dtype
    assert bool(jnp.all(y == x))

    # backward: gradient of sum(layer(x)) must be -alpha everywhere
    g = jax.jit(jax.grad(lambda inp: jnp.sum(layer(inp))))(x)
    jax.block_until_ready(g)
    assert g.shape == x.shape
    assert bool(jnp.allclose(g, -float(layer.alpha)))
    assert bool(jnp.all(jnp.isfinite(y))) and bool(jnp.all(jnp.isfinite(g)))

    print("KERNEL_OK")
</pallas_src>

<mosaic_0001>
module attributes {stable_mosaic.version = 11 : i64} {
  func.func @_copy_kernel(%arg0: i32, %arg1: memref<32x128xf32, #tpu.memory_space<vmem>>, %arg2: memref<32x128xf32, #tpu.memory_space<vmem>>) attributes {dimension_semantics = [#tpu.dimension_semantics<parallel>], iteration_bounds = array<i64: 1>, scalar_prefetch = 0 : i64, scratch_operands = 0 : i64, tpu.core_type = #tpu.core_type<tc>, window_params = [{transform_indices = @transform_0, window_bounds = array<i64: 32, 128>}, {transform_indices = @transform_1, window_bounds = array<i64: 32, 128>}]} {
    %c0 = arith.constant 0 : index
    %c0_0 = arith.constant 0 : index
    %0 = vector.load %arg1[%c0, %c0_0] : memref<32x128xf32, #tpu.memory_space<vmem>>, vector<32x128xf32>
    %c0_1 = arith.constant 0 : index
    %c0_2 = arith.constant 0 : index
    %1 = vector.load %arg2[%c0_1, %c0_2] : memref<32x128xf32, #tpu.memory_space<vmem>>, vector<32x128xf32>
    tpu.vector_store %arg2[%c0_1, %c0_2], %0 {strides = array<i32>} : memref<32x128xf32, #tpu.memory_space<vmem>>, vector<32x128xf32>,
    return
  }
  func.func @transform_0(%arg0: i32) -> (i32, i32) {
    %c0_i32 = arith.constant 0 : i32
    %c0_i32_0 = arith.constant 0 : i32
    return %arg0, %c0_i32 : i32, i32
  }
  func.func @transform_1(%arg0: i32) -> (i32, i32) {
    %c0_i32 = arith.constant 0 : i32
    %c0_i32_0 = arith.constant 0 : i32
    return %arg0, %c0_i32 : i32, i32
  }
}

</mosaic_0001>

<llo_original>
// kernel: a_call__.1
$region0: #{a_call__.1}
  #allocation0 [shape = 'u32[]', space=smem, size = 0x4, offset = 0x4, fixed_abs, tag = 'smem constant byte address 0x4 - core index']
  #allocation1 [shape = 'u32[72,128]{1,0:T(1,128)}', space=vmem, size = 0x9000, scoped, tag = 'internal scratch']
  %s0 = inlined_call_operand.vmem [shape: f32[32,128], index: 0, kind: input, shape index: {}]
  %s1 = inlined_call_operand.vmem [shape: f32[32,128], index: 1, kind: output, shape index: {}]
  %s2 = sld [smem:[#allocation0]]
  $region14: #{a_call__.1} parent=0
    _
  %s4 = ssub.s32 1, %s2
  %s5 = scalar_select 0, %s4, %s2
  // Predicated region
  $region2: #{a_call__.1} parent=0 // pred_check
    _
  $region3: #{a_call__.1} parent=0 // pred_check_branch
    %7 = sbr.rel (0) target = $region5
  $region4: #{a_call__.1} parent=0 // pred_region
    _
  $region5: #{a_call__.1} parent=0 // pred_fallthru
    _
  %v8 = vld [vmem:[%s0] sm:$0xff]
  %v9 = vld [vmem:[%s0 + $0x8] sm:$0xff]
  %v10 = vld [vmem:[%s0 + $0x10] sm:$0xff]
  %v11 = vld [vmem:[%s0 + $0x18] sm:$0xff]
  %12 = vst [vmem:[%s1] sm:$0xff] %v8
  %13 = vst [vmem:[%s1 + $0x8] sm:$0xff] %v9
  %14 = vst [vmem:[%s1 + $0x10] sm:$0xff] %v10
  %15 = vst [vmem:[%s1 + $0x18] sm:$0xff] %v11
  // Predicated region
  $region6: #{a_call__.1} parent=0 // pred_check
    _
  $region7: #{a_call__.1} parent=0 // pred_check_branch
    %17 = sbr.rel (0) target = $region9
  $region8: #{a_call__.1} parent=0 // pred_region
    _
  $region9: #{a_call__.1} parent=0 // pred_fallthru
    _
  // Predicated region
  $region10: #{a_call__.1} parent=0 // pred_check
    _
  $region11: #{a_call__.1} parent=0 // pred_check_branch
    %19 = sbr.rel (0) target = $region13
  $region12: #{a_call__.1} parent=0 // pred_region
    _
  $region13: #{a_call__.1} parent=0 // pred_fallthru
    _

</llo_original>
